<compile_context>
chip_gen: v5e
topology: v5e:2x2
jax: 0.10.0
libtpu: 0.0.40
codegen_flags: <defaults>
</compile_context>

<pallas_src>
import jax
import jax.numpy as jnp
from jax.experimental import pallas as pl
from jax.experimental.pallas import tpu as pltpu


def _round_up(n, m):
    return (n + m - 1) // m * m


def rnn_kernel(x_ref, h_init_ref,
               wih0_ref, whh0_ref, b0_ref,
               wih1_ref, whh1_ref, b1_ref,
               wfc_ref, bfc_ref,
               out_ref, hn_ref):
    """Fused 2-layer vanilla RNN recurrence + final Linear on the last step.

      h0_t = tanh(x_t @ Wih0 + h0_{t-1} @ Whh0 + b0)
      h1_t = tanh(h0_t @ Wih1 + h1_{t-1} @ Whh1 + b1)
      out  = h1_T @ Wfc + bfc
    """
    T, Bp, Dp = x_ref.shape
    Hp = whh0_ref.shape[0]
    bf16 = jnp.bfloat16

    # ---- hoisted layer-0 input projection: one big MXU matmul ------------
    x_all = x_ref[...].reshape(T * Bp, Dp)                      # bf16 slab
    xp = jnp.dot(x_all, wih0_ref[...], preferred_element_type=jnp.float32)
    xp = (xp + b0_ref[...]).reshape(T, Bp, Hp)                  # bias folded once (f32)

    b1b = jnp.broadcast_to(b1_ref[...], (Bp, Hp))               # hoisted broadcast (f32)

    h0 = h_init_ref[0]                                          # (Bp, Hp) f32
    h1 = h_init_ref[1]                                          # (Bp, Hp) f32

    # ---- serial recurrence: fully unrolled, static indices ---------------
    # Weight refs are re-read per step (cheap vld, hidden under MXU) instead of
    # kept live across the whole unrolled body, to avoid vreg spills.
    for t in range(T):
        # Independent of h0_t: split off the critical path so it can overlap
        # with the layer-0 dot + tanh.
        p1 = jnp.dot(h1.astype(bf16), whh1_ref[...],
                     preferred_element_type=jnp.float32)
        h0 = jnp.tanh(xp[t] + jnp.dot(h0.astype(bf16), whh0_ref[...],
                                      preferred_element_type=jnp.float32))
        h1 = jnp.tanh(jnp.dot(h0.astype(bf16), wih1_ref[...],
                              preferred_element_type=jnp.float32) + p1 + b1b)

    # ---- final Linear on last hidden state (lane-dense f32 stores) -------
    out_ref[...] = (jnp.dot(h1.astype(bf16), wfc_ref[...],
                            preferred_element_type=jnp.float32) + bfc_ref[...])
    hn_ref[0] = h0
    hn_ref[1] = h1


def rnn_model_forward(x, hidden, params):
    """Pallas-backed equivalent of RNNModel.forward(x, hidden)."""
    B, T, D = x.shape
    L, _, H = hidden.shape
    assert L == 2, "kernel is specialized for num_layers=2"
    C = params["w_fc"].shape[0]

    # ---- pad to TPU-friendly shapes (lane=128, sublane=8), zero filled ----
    Bp = _round_up(B, 8)
    Dp = _round_up(D, 128)
    Hp = _round_up(H, 128)
    Cp = _round_up(C, 128)

    def pad2(a, r, c):
        return jnp.pad(a, ((0, r - a.shape[0]), (0, c - a.shape[1])))

    bf16 = jnp.bfloat16

    # x -> time-major (T, Bp, Dp), bf16, so per-step slabs are contiguous.
    x_p = jnp.pad(x, ((0, Bp - B), (0, 0), (0, Dp - D))).transpose(1, 0, 2).astype(bf16)
    h_p = jnp.pad(hidden, ((0, 0), (0, Bp - B), (0, Hp - H)))            # f32

    # Pre-transpose PyTorch-convention weights (out, in) -> (in, out), fold
    # the two PyTorch biases (b_ih + b_hh), zero-pad, cast weights to bf16.
    wih0 = pad2(params["w_ih_l0"].T, Dp, Hp).astype(bf16)                # (Dp, Hp)
    whh0 = pad2(params["w_hh_l0"].T, Hp, Hp).astype(bf16)                # (Hp, Hp)
    b0 = jnp.pad(params["b_ih_l0"] + params["b_hh_l0"], (0, Hp - H)).reshape(1, Hp)

    wih1 = pad2(params["w_ih_l1"].T, Hp, Hp).astype(bf16)                # (Hp, Hp)
    whh1 = pad2(params["w_hh_l1"].T, Hp, Hp).astype(bf16)                # (Hp, Hp)
    b1 = jnp.pad(params["b_ih_l1"] + params["b_hh_l1"], (0, Hp - H)).reshape(1, Hp)

    wfc = pad2(params["w_fc"].T, Hp, Cp).astype(bf16)                    # (Hp, Cp)
    bfc = jnp.pad(params["b_fc"], (0, Cp - C)).reshape(1, Cp)

    operands = (x_p, h_p, wih0, whh0, b0, wih1, whh1, b1, wfc, bfc)

    # Single invocation (no grid): whole-array blocks resident in VMEM, no
    # pointless double-buffering.  Working set here is ~0.2 MiB, far below
    # every generation's VMEM.
    vmem_spec = pl.BlockSpec(memory_space=pltpu.MemorySpace.VMEM)

    out_p, hn_p = pl.pallas_call(
        rnn_kernel,
        out_shape=(jax.ShapeDtypeStruct((Bp, Cp), jnp.float32),
                   jax.ShapeDtypeStruct((L, Bp, Hp), jnp.float32)),
        in_specs=[vmem_spec] * len(operands),
        out_specs=(vmem_spec, vmem_spec),
    )(*operands)

    # Slice the padding back off.
    return out_p[:B, :C], hn_p[:, :B, :H]


def init_params(key, input_size, hidden_size, num_classes):
    """Deterministic init matching PyTorch shapes (U(-1/sqrt(H), 1/sqrt(H)))."""
    H = hidden_size
    k = 1.0 / jnp.sqrt(jnp.float32(H))
    keys = jax.random.split(key, 10)

    def u(kk, shape):
        return jax.random.uniform(kk, shape, jnp.float32, -k, k)

    return {
        "w_ih_l0": u(keys[0], (H, input_size)),
        "w_hh_l0": u(keys[1], (H, H)),
        "b_ih_l0": u(keys[2], (H,)),
        "b_hh_l0": u(keys[3], (H,)),
        "w_ih_l1": u(keys[4], (H, H)),
        "w_hh_l1": u(keys[5], (H, H)),
        "b_ih_l1": u(keys[6], (H,)),
        "b_hh_l1": u(keys[7], (H,)),
        "w_fc": u(keys[8], (num_classes, H)),
        "b_fc": u(keys[9], (num_classes,)),
    }


def reference_forward(x, hidden, params):
    """Pure-JAX f32 reference mirroring torch.nn.RNN + Linear semantics."""
    B, T, D = x.shape
    h0, h1 = hidden[0], hidden[1]
    for t in range(T):
        x_t = x[:, t, :]
        h0 = jnp.tanh(x_t @ params["w_ih_l0"].T + params["b_ih_l0"]
                      + h0 @ params["w_hh_l0"].T + params["b_hh_l0"])
        h1 = jnp.tanh(h0 @ params["w_ih_l1"].T + params["b_ih_l1"]
                      + h1 @ params["w_hh_l1"].T + params["b_hh_l1"])
    out = h1 @ params["w_fc"].T + params["b_fc"]
    return out, jnp.stack([h0, h1], axis=0)


if __name__ == "__main__":
    # Small shapes consistent with the module's forward contract
    # (hidden_size=128 is the module default and already lane-aligned).
    B, T = 2, 8
    INPUT_SIZE, HIDDEN_SIZE, NUM_LAYERS, NUM_CLASSES = 64, 128, 2, 3

    key = jax.random.PRNGKey(0)
    k_x, k_p = jax.random.split(key)

    x = jax.random.normal(k_x, (B, T, INPUT_SIZE), jnp.float32)
    hidden = jnp.zeros((NUM_LAYERS, B, HIDDEN_SIZE), jnp.float32)  # initHidden
    params = init_params(k_p, INPUT_SIZE, HIDDEN_SIZE, NUM_CLASSES)

    out, hn = jax.block_until_ready(rnn_model_forward(x, hidden, params))

    # Sanity-check against a pure-JAX f32 reference of the same math.  The
    # kernel quantizes matmul operands to bf16 (f32 accumulate) and the error
    # compounds over the 8-step recurrence, hence the bf16-level tolerance.
    out_ref, hn_ref = reference_forward(x, hidden, params)
    assert out.shape == (B, NUM_CLASSES) and hn.shape == (NUM_LAYERS, B, HIDDEN_SIZE)
    assert jnp.allclose(out, out_ref, atol=5e-2, rtol=5e-2)
    assert jnp.allclose(hn, hn_ref, atol=5e-2, rtol=5e-2)

    print("KERNEL_OK")
</pallas_src>

<mosaic_0001>
module attributes {stable_mosaic.version = 11 : i64} {
  func.func @rnn_kernel(%arg0: memref<8x8x128xbf16, #tpu.memory_space<vmem>>, %arg1: memref<2x8x128xf32, #tpu.memory_space<vmem>>, %arg2: memref<128x128xbf16, #tpu.memory_space<vmem>>, %arg3: memref<128x128xbf16, #tpu.memory_space<vmem>>, %arg4: memref<1x128xf32, #tpu.memory_space<vmem>>, %arg5: memref<128x128xbf16, #tpu.memory_space<vmem>>, %arg6: memref<128x128xbf16, #tpu.memory_space<vmem>>, %arg7: memref<1x128xf32, #tpu.memory_space<vmem>>, %arg8: memref<128x128xbf16, #tpu.memory_space<vmem>>, %arg9: memref<1x128xf32, #tpu.memory_space<vmem>>, %arg10: memref<8x128xf32, #tpu.memory_space<vmem>>, %arg11: memref<2x8x128xf32, #tpu.memory_space<vmem>>) attributes {dimension_semantics = [], scalar_prefetch = 0 : i64, scratch_operands = 0 : i64, tpu.core_type = #tpu.core_type<tc>} {
    %c0 = arith.constant 0 : index
    %c0_0 = arith.constant 0 : index
    %c0_1 = arith.constant 0 : index
    %0 = vector.load %arg0[%c0, %c0_0, %c0_1] : memref<8x8x128xbf16, #tpu.memory_space<vmem>>, vector<8x8x128xbf16>
    %1 = vector.shape_cast %0 : vector<8x8x128xbf16> to vector<64x128xbf16>
    %c0_2 = arith.constant 0 : index
    %c0_3 = arith.constant 0 : index
    %2 = vector.load %arg2[%c0_2, %c0_3] : memref<128x128xbf16, #tpu.memory_space<vmem>>, vector<128x128xbf16>
    %cst = arith.constant dense<0.000000e+00> : vector<64x128xf32>
    %3 = tpu.matmul %1, %2, %cst {dimension_numbers = #tpu.dot_dimension_numbers<[1], [0], [0], [1], [0, 0, 1, 1], [], []>} : vector<64x128xbf16>, vector<128x128xbf16>, vector<64x128xf32> -> vector<64x128xf32>
    %c0_4 = arith.constant 0 : index
    %c0_5 = arith.constant 0 : index
    %4 = vector.load %arg4[%c0_4, %c0_5] : memref<1x128xf32, #tpu.memory_space<vmem>>, vector<1x128xf32>
    %5 = vector.broadcast %4 : vector<1x128xf32> to vector<64x128xf32>
    %6 = arith.addf %3, %5 : vector<64x128xf32>
    %7 = vector.shape_cast %6 : vector<64x128xf32> to vector<8x8x128xf32>
    %c0_6 = arith.constant 0 : index
    %c0_7 = arith.constant 0 : index
    %8 = vector.load %arg7[%c0_6, %c0_7] : memref<1x128xf32, #tpu.memory_space<vmem>>, vector<1x128xf32>
    %9 = vector.shape_cast %8 : vector<1x128xf32> to vector<1x128xf32>
    %10 = vector.broadcast %9 : vector<1x128xf32> to vector<8x128xf32>
    %c0_8 = arith.constant 0 : index
    %c0_9 = arith.constant 0 : index
    %c0_10 = arith.constant 0 : index
    %11 = vector.load %arg1[%c0_8, %c0_9, %c0_10] : memref<2x8x128xf32, #tpu.memory_space<vmem>>, vector<1x8x128xf32>
    %12 = vector.shape_cast %11 : vector<1x8x128xf32> to vector<8x128xf32>
    %c1 = arith.constant 1 : index
    %c0_11 = arith.constant 0 : index
    %c0_12 = arith.constant 0 : index
    %13 = vector.load %arg1[%c1, %c0_11, %c0_12] : memref<2x8x128xf32, #tpu.memory_space<vmem>>, vector<1x8x128xf32>
    %14 = vector.shape_cast %13 : vector<1x8x128xf32> to vector<8x128xf32>
    %15 = arith.truncf %14 : vector<8x128xf32> to vector<8x128xbf16>
    %c0_13 = arith.constant 0 : index
    %c0_14 = arith.constant 0 : index
    %16 = vector.load %arg6[%c0_13, %c0_14] : memref<128x128xbf16, #tpu.memory_space<vmem>>, vector<128x128xbf16>
    %cst_15 = arith.constant dense<0.000000e+00> : vector<8x128xf32>
    %17 = tpu.matmul %15, %16, %cst_15 {dimension_numbers = #tpu.dot_dimension_numbers<[1], [0], [0], [1], [0, 0, 1, 1], [], []>} : vector<8x128xbf16>, vector<128x128xbf16>, vector<8x128xf32> -> vector<8x128xf32>
    %18 = vector.extract_strided_slice %7 {offsets = [0, 0, 0], sizes = [1, 8, 128], strides = [1, 1, 1]} : vector<8x8x128xf32> to vector<1x8x128xf32>
    %19 = vector.shape_cast %18 : vector<1x8x128xf32> to vector<8x128xf32>
    %20 = arith.truncf %12 : vector<8x128xf32> to vector<8x128xbf16>
    %c0_16 = arith.constant 0 : index
    %c0_17 = arith.constant 0 : index
    %21 = vector.load %arg3[%c0_16, %c0_17] : memref<128x128xbf16, #tpu.memory_space<vmem>>, vector<128x128xbf16>
    %cst_18 = arith.constant dense<0.000000e+00> : vector<8x128xf32>
    %22 = tpu.matmul %20, %21, %cst_18 {dimension_numbers = #tpu.dot_dimension_numbers<[1], [0], [0], [1], [0, 0, 1, 1], [], []>} : vector<8x128xbf16>, vector<128x128xbf16>, vector<8x128xf32> -> vector<8x128xf32>
    %23 = arith.addf %19, %22 : vector<8x128xf32>
    %24 = math.tanh %23 : vector<8x128xf32>
    %25 = arith.truncf %24 : vector<8x128xf32> to vector<8x128xbf16>
    %c0_19 = arith.constant 0 : index
    %c0_20 = arith.constant 0 : index
    %26 = vector.load %arg5[%c0_19, %c0_20] : memref<128x128xbf16, #tpu.memory_space<vmem>>, vector<128x128xbf16>
    %cst_21 = arith.constant dense<0.000000e+00> : vector<8x128xf32>
    %27 = tpu.matmul %25, %26, %cst_21 {dimension_numbers = #tpu.dot_dimension_numbers<[1], [0], [0], [1], [0, 0, 1, 1], [], []>} : vector<8x128xbf16>, vector<128x128xbf16>, vector<8x128xf32> -> vector<8x128xf32>
    %28 = arith.addf %27, %17 : vector<8x128xf32>
    %29 = arith.addf %28, %10 : vector<8x128xf32>
    %30 = math.tanh %29 : vector<8x128xf32>
    %31 = arith.truncf %30 : vector<8x128xf32> to vector<8x128xbf16>
    %c0_22 = arith.constant 0 : index
    %c0_23 = arith.constant 0 : index
    %32 = vector.load %arg6[%c0_22, %c0_23] : memref<128x128xbf16, #tpu.memory_space<vmem>>, vector<128x128xbf16>
    %cst_24 = arith.constant dense<0.000000e+00> : vector<8x128xf32>
    %33 = tpu.matmul %31, %32, %cst_24 {dimension_numbers = #tpu.dot_dimension_numbers<[1], [0], [0], [1], [0, 0, 1, 1], [], []>} : vector<8x128xbf16>, vector<128x128xbf16>, vector<8x128xf32> -> vector<8x128xf32>
    %34 = vector.extract_strided_slice %7 {offsets = [1, 0, 0], sizes = [1, 8, 128], strides = [1, 1, 1]} : vector<8x8x128xf32> to vector<1x8x128xf32>
    %35 = vector.shape_cast %34 : vector<1x8x128xf32> to vector<8x128xf32>
    %36 = arith.truncf %24 : vector<8x128xf32> to vector<8x128xbf16>
    %c0_25 = arith.constant 0 : index
    %c0_26 = arith.constant 0 : index
    %37 = vector.load %arg3[%c0_25, %c0_26] : memref<128x128xbf16, #tpu.memory_space<vmem>>, vector<128x128xbf16>
    %cst_27 = arith.constant dense<0.000000e+00> : vector<8x128xf32>
    %38 = tpu.matmul %36, %37, %cst_27 {dimension_numbers = #tpu.dot_dimension_numbers<[1], [0], [0], [1], [0, 0, 1, 1], [], []>} : vector<8x128xbf16>, vector<128x128xbf16>, vector<8x128xf32> -> vector<8x128xf32>
    %39 = arith.addf %35, %38 : vector<8x128xf32>
    %40 = math.tanh %39 : vector<8x128xf32>
    %41 = arith.truncf %40 : vector<8x128xf32> to vector<8x128xbf16>
    %c0_28 = arith.constant 0 : index
    %c0_29 = arith.constant 0 : index
    %42 = vector.load %arg5[%c0_28, %c0_29] : memref<128x128xbf16, #tpu.memory_space<vmem>>, vector<128x128xbf16>
    %cst_30 = arith.constant dense<0.000000e+00> : vector<8x128xf32>
    %43 = tpu.matmul %41, %42, %cst_30 {dimension_numbers = #tpu.dot_dimension_numbers<[1], [0], [0], [1], [0, 0, 1, 1], [], []>} : vector<8x128xbf16>, vector<128x128xbf16>, vector<8x128xf32> -> vector<8x128xf32>
    %44 = arith.addf %43, %33 : vector<8x128xf32>
    %45 = arith.addf %44, %10 : vector<8x128xf32>
    %46 = math.tanh %45 : vector<8x128xf32>
    %47 = arith.truncf %46 : vector<8x128xf32> to vector<8x128xbf16>
    %c0_31 = arith.constant 0 : index
    %c0_32 = arith.constant 0 : index
    %48 = vector.load %arg6[%c0_31, %c0_32] : memref<128x128xbf16, #tpu.memory_space<vmem>>, vector<128x128xbf16>
    %cst_33 = arith.constant dense<0.000000e+00> : vector<8x128xf32>
    %49 = tpu.matmul %47, %48, %cst_33 {dimension_numbers = #tpu.dot_dimension_numbers<[1], [0], [0], [1], [0, 0, 1, 1], [], []>} : vector<8x128xbf16>, vector<128x128xbf16>, vector<8x128xf32> -> vector<8x128xf32>
    %50 = vector.extract_strided_slice %7 {offsets = [2, 0, 0], sizes = [1, 8, 128], strides = [1, 1, 1]} : vector<8x8x128xf32> to vector<1x8x128xf32>
    %51 = vector.shape_cast %50 : vector<1x8x128xf32> to vector<8x128xf32>
    %52 = arith.truncf %40 : vector<8x128xf32> to vector<8x128xbf16>
    %c0_34 = arith.constant 0 : index
    %c0_35 = arith.constant 0 : index
    %53 = vector.load %arg3[%c0_34, %c0_35] : memref<128x128xbf16, #tpu.memory_space<vmem>>, vector<128x128xbf16>
    %cst_36 = arith.constant dense<0.000000e+00> : vector<8x128xf32>
    %54 = tpu.matmul %52, %53, %cst_36 {dimension_numbers = #tpu.dot_dimension_numbers<[1], [0], [0], [1], [0, 0, 1, 1], [], []>} : vector<8x128xbf16>, vector<128x128xbf16>, vector<8x128xf32> -> vector<8x128xf32>
    %55 = arith.addf %51, %54 : vector<8x128xf32>
    %56 = math.tanh %55 : vector<8x128xf32>
    %57 = arith.truncf %56 : vector<8x128xf32> to vector<8x128xbf16>
    %c0_37 = arith.constant 0 : index
    %c0_38 = arith.constant 0 : index
    %58 = vector.load %arg5[%c0_37, %c0_38] : memref<128x128xbf16, #tpu.memory_space<vmem>>, vector<128x128xbf16>
    %cst_39 = arith.constant dense<0.000000e+00> : vector<8x128xf32>
    %59 = tpu.matmul %57, %58, %cst_39 {dimension_numbers = #tpu.dot_dimension_numbers<[1], [0], [0], [1], [0, 0, 1, 1], [], []>} : vector<8x128xbf16>, vector<128x128xbf16>, vector<8x128xf32> -> vector<8x128xf32>
    %60 = arith.addf %59, %49 : vector<8x128xf32>
    %61 = arith.addf %60, %10 : vector<8x128xf32>
    %62 = math.tanh %61 : vector<8x128xf32>
    %63 = arith.truncf %62 : vector<8x128xf32> to vector<8x128xbf16>
    %c0_40 = arith.constant 0 : index
    %c0_41 = arith.constant 0 : index
    %64 = vector.load %arg6[%c0_40, %c0_41] : memref<128x128xbf16, #tpu.memory_space<vmem>>, vector<128x128xbf16>
    %cst_42 = arith.constant dense<0.000000e+00> : vector<8x128xf32>
    %65 = tpu.matmul %63, %64, %cst_42 {dimension_numbers = #tpu.dot_dimension_numbers<[1], [0], [0], [1], [0, 0, 1, 1], [], []>} : vector<8x128xbf16>, vector<128x128xbf16>, vector<8x128xf32> -> vector<8x128xf32>
    %66 = vector.extract_strided_slice %7 {offsets = [3, 0, 0], sizes = [1, 8, 128], strides = [1, 1, 1]} : vector<8x8x128xf32> to vector<1x8x128xf32>
    %67 = vector.shape_cast %66 : vector<1x8x128xf32> to vector<8x128xf32>
    %68 = arith.truncf %56 : vector<8x128xf32> to vector<8x128xbf16>
    %c0_43 = arith.constant 0 : index
    %c0_44 = arith.constant 0 : index
    %69 = vector.load %arg3[%c0_43, %c0_44] : memref<128x128xbf16, #tpu.memory_space<vmem>>, vector<128x128xbf16>
    %cst_45 = arith.constant dense<0.000000e+00> : vector<8x128xf32>
    %70 = tpu.matmul %68, %69, %cst_45 {dimension_numbers = #tpu.dot_dimension_numbers<[1], [0], [0], [1], [0, 0, 1, 1], [], []>} : vector<8x128xbf16>, vector<128x128xbf16>, vector<8x128xf32> -> vector<8x128xf32>
    %71 = arith.addf %67, %70 : vector<8x128xf32>
    %72 = math.tanh %71 : vector<8x128xf32>
    %73 = arith.truncf %72 : vector<8x128xf32> to vector<8x128xbf16>
    %c0_46 = arith.constant 0 : index
    %c0_47 = arith.constant 0 : index
    %74 = vector.load %arg5[%c0_46, %c0_47] : memref<128x128xbf16, #tpu.memory_space<vmem>>, vector<128x128xbf16>
    %cst_48 = arith.constant dense<0.000000e+00> : vector<8x128xf32>
    %75 = tpu.matmul %73, %74, %cst_48 {dimension_numbers = #tpu.dot_dimension_numbers<[1], [0], [0], [1], [0, 0, 1, 1], [], []>} : vector<8x128xbf16>, vector<128x128xbf16>, vector<8x128xf32> -> vector<8x128xf32>
    %76 = arith.addf %75, %65 : vector<8x128xf32>
    %77 = arith.addf %76, %10 : vector<8x128xf32>
    %78 = math.tanh %77 : vector<8x128xf32>
    %79 = arith.truncf %78 : vector<8x128xf32> to vector<8x128xbf16>
    %c0_49 = arith.constant 0 : index
    %c0_50 = arith.constant 0 : index
    %80 = vector.load %arg6[%c0_49, %c0_50] : memref<128x128xbf16, #tpu.memory_space<vmem>>, vector<128x128xbf16>
    %cst_51 = arith.constant dense<0.000000e+00> : vector<8x128xf32>
    %81 = tpu.matmul %79, %80, %cst_51 {dimension_numbers = #tpu.dot_dimension_numbers<[1], [0], [0], [1], [0, 0, 1, 1], [], []>} : vector<8x128xbf16>, vector<128x128xbf16>, vector<8x128xf32> -> vector<8x128xf32>
    %82 = vector.extract_strided_slice %7 {offsets = [4, 0, 0], sizes = [1, 8, 128], strides = [1, 1, 1]} : vector<8x8x128xf32> to vector<1x8x128xf32>
    %83 = vector.shape_cast %82 : vector<1x8x128xf32> to vector<8x128xf32>
    %84 = arith.truncf %72 : vector<8x128xf32> to vector<8x128xbf16>
    %c0_52 = arith.constant 0 : index
    %c0_53 = arith.constant 0 : index
    %85 = vector.load %arg3[%c0_52, %c0_53] : memref<128x128xbf16, #tpu.memory_space<vmem>>, vector<128x128xbf16>
    %cst_54 = arith.constant dense<0.000000e+00> : vector<8x128xf32>
    %86 = tpu.matmul %84, %85, %cst_54 {dimension_numbers = #tpu.dot_dimension_numbers<[1], [0], [0], [1], [0, 0, 1, 1], [], []>} : vector<8x128xbf16>, vector<128x128xbf16>, vector<8x128xf32> -> vector<8x128xf32>
    %87 = arith.addf %83, %86 : vector<8x128xf32>
    %88 = math.tanh %87 : vector<8x128xf32>
    %89 = arith.truncf %88 : vector<8x128xf32> to vector<8x128xbf16>
    %c0_55 = arith.constant 0 : index
    %c0_56 = arith.constant 0 : index
    %90 = vector.load %arg5[%c0_55, %c0_56] : memref<128x128xbf16, #tpu.memory_space<vmem>>, vector<128x128xbf16>
    %cst_57 = arith.constant dense<0.000000e+00> : vector<8x128xf32>
    %91 = tpu.matmul %89, %90, %cst_57 {dimension_numbers = #tpu.dot_dimension_numbers<[1], [0], [0], [1], [0, 0, 1, 1], [], []>} : vector<8x128xbf16>, vector<128x128xbf16>, vector<8x128xf32> -> vector<8x128xf32>
    %92 = arith.addf %91, %81 : vector<8x128xf32>
    %93 = arith.addf %92, %10 : vector<8x128xf32>
    %94 = math.tanh %93 : vector<8x128xf32>
    %95 = arith.truncf %94 : vector<8x128xf32> to vector<8x128xbf16>
    %c0_58 = arith.constant 0 : index
    %c0_59 = arith.constant 0 : index
    %96 = vector.load %arg6[%c0_58, %c0_59] : memref<128x128xbf16, #tpu.memory_space<vmem>>, vector<128x128xbf16>
    %cst_60 = arith.constant dense<0.000000e+00> : vector<8x128xf32>
    %97 = tpu.matmul %95, %96, %cst_60 {dimension_numbers = #tpu.dot_dimension_numbers<[1], [0], [0], [1], [0, 0, 1, 1], [], []>} : vector<8x128xbf16>, vector<128x128xbf16>, vector<8x128xf32> -> vector<8x128xf32>
    %98 = vector.extract_strided_slice %7 {offsets = [5, 0, 0], sizes = [1, 8, 128], strides = [1, 1, 1]} : vector<8x8x128xf32> to vector<1x8x128xf32>
    %99 = vector.shape_cast %98 : vector<1x8x128xf32> to vector<8x128xf32>
    %100 = arith.truncf %88 : vector<8x128xf32> to vector<8x128xbf16>
    %c0_61 = arith.constant 0 : index
    %c0_62 = arith.constant 0 : index
    %101 = vector.load %arg3[%c0_61, %c0_62] : memref<128x128xbf16, #tpu.memory_space<vmem>>, vector<128x128xbf16>
    %cst_63 = arith.constant dense<0.000000e+00> : vector<8x128xf32>
    %102 = tpu.matmul %100, %101, %cst_63 {dimension_numbers = #tpu.dot_dimension_numbers<[1], [0], [0], [1], [0, 0, 1, 1], [], []>} : vector<8x128xbf16>, vector<128x128xbf16>, vector<8x128xf32> -> vector<8x128xf32>
    %103 = arith.addf %99, %102 : vector<8x128xf32>
    %104 = math.tanh %103 : vector<8x128xf32>
    %105 = arith.truncf %104 : vector<8x128xf32> to vector<8x128xbf16>
    %c0_64 = arith.constant 0 : index
    %c0_65 = arith.constant 0 : index
    %106 = vector.load %arg5[%c0_64, %c0_65] : memref<128x128xbf16, #tpu.memory_space<vmem>>, vector<128x128xbf16>
    %cst_66 = arith.constant dense<0.000000e+00> : vector<8x128xf32>
    %107 = tpu.matmul %105, %106, %cst_66 {dimension_numbers = #tpu.dot_dimension_numbers<[1], [0], [0], [1], [0, 0, 1, 1], [], []>} : vector<8x128xbf16>, vector<128x128xbf16>, vector<8x128xf32> -> vector<8x128xf32>
    %108 = arith.addf %107, %97 : vector<8x128xf32>
    %109 = arith.addf %108, %10 : vector<8x128xf32>
    %110 = math.tanh %109 : vector<8x128xf32>
    %111 = arith.truncf %110 : vector<8x128xf32> to vector<8x128xbf16>
    %c0_67 = arith.constant 0 : index
    %c0_68 = arith.constant 0 : index
    %112 = vector.load %arg6[%c0_67, %c0_68] : memref<128x128xbf16, #tpu.memory_space<vmem>>, vector<128x128xbf16>
    %cst_69 = arith.constant dense<0.000000e+00> : vector<8x128xf32>
    %113 = tpu.matmul %111, %112, %cst_69 {dimension_numbers = #tpu.dot_dimension_numbers<[1], [0], [0], [1], [0, 0, 1, 1], [], []>} : vector<8x128xbf16>, vector<128x128xbf16>, vector<8x128xf32> -> vector<8x128xf32>
    %114 = vector.extract_strided_slice %7 {offsets = [6, 0, 0], sizes = [1, 8, 128], strides = [1, 1, 1]} : vector<8x8x128xf32> to vector<1x8x128xf32>
    %115 = vector.shape_cast %114 : vector<1x8x128xf32> to vector<8x128xf32>
    %116 = arith.truncf %104 : vector<8x128xf32> to vector<8x128xbf16>
    %c0_70 = arith.constant 0 : index
    %c0_71 = arith.constant 0 : index
    %117 = vector.load %arg3[%c0_70, %c0_71] : memref<128x128xbf16, #tpu.memory_space<vmem>>, vector<128x128xbf16>
    %cst_72 = arith.constant dense<0.000000e+00> : vector<8x128xf32>
    %118 = tpu.matmul %116, %117, %cst_72 {dimension_numbers = #tpu.dot_dimension_numbers<[1], [0], [0], [1], [0, 0, 1, 1], [], []>} : vector<8x128xbf16>, vector<128x128xbf16>, vector<8x128xf32> -> vector<8x128xf32>
    %119 = arith.addf %115, %118 : vector<8x128xf32>
    %120 = math.tanh %119 : vector<8x128xf32>
    %121 = arith.truncf %120 : vector<8x128xf32> to vector<8x128xbf16>
    %c0_73 = arith.constant 0 : index
    %c0_74 = arith.constant 0 : index
    %122 = vector.load %arg5[%c0_73, %c0_74] : memref<128x128xbf16, #tpu.memory_space<vmem>>, vector<128x128xbf16>
    %cst_75 = arith.constant dense<0.000000e+00> : vector<8x128xf32>
    %123 = tpu.matmul %121, %122, %cst_75 {dimension_numbers = #tpu.dot_dimension_numbers<[1], [0], [0], [1], [0, 0, 1, 1], [], []>} : vector<8x128xbf16>, vector<128x128xbf16>, vector<8x128xf32> -> vector<8x128xf32>
    %124 = arith.addf %123, %113 : vector<8x128xf32>
    %125 = arith.addf %124, %10 : vector<8x128xf32>
    %126 = math.tanh %125 : vector<8x128xf32>
    %127 = arith.truncf %126 : vector<8x128xf32> to vector<8x128xbf16>
    %c0_76 = arith.constant 0 : index
    %c0_77 = arith.constant 0 : index
    %128 = vector.load %arg6[%c0_76, %c0_77] : memref<128x128xbf16, #tpu.memory_space<vmem>>, vector<128x128xbf16>
    %cst_78 = arith.constant dense<0.000000e+00> : vector<8x128xf32>
    %129 = tpu.matmul %127, %128, %cst_78 {dimension_numbers = #tpu.dot_dimension_numbers<[1], [0], [0], [1], [0, 0, 1, 1], [], []>} : vector<8x128xbf16>, vector<128x128xbf16>, vector<8x128xf32> -> vector<8x128xf32>
    %130 = vector.extract_strided_slice %7 {offsets = [7, 0, 0], sizes = [1, 8, 128], strides = [1, 1, 1]} : vector<8x8x128xf32> to vector<1x8x128xf32>
    %131 = vector.shape_cast %130 : vector<1x8x128xf32> to vector<8x128xf32>
    %132 = arith.truncf %120 : vector<8x128xf32> to vector<8x128xbf16>
    %c0_79 = arith.constant 0 : index
    %c0_80 = arith.constant 0 : index
    %133 = vector.load %arg3[%c0_79, %c0_80] : memref<128x128xbf16, #tpu.memory_space<vmem>>, vector<128x128xbf16>
    %cst_81 = arith.constant dense<0.000000e+00> : vector<8x128xf32>
    %134 = tpu.matmul %132, %133, %cst_81 {dimension_numbers = #tpu.dot_dimension_numbers<[1], [0], [0], [1], [0, 0, 1, 1], [], []>} : vector<8x128xbf16>, vector<128x128xbf16>, vector<8x128xf32> -> vector<8x128xf32>
    %135 = arith.addf %131, %134 : vector<8x128xf32>
    %136 = math.tanh %135 : vector<8x128xf32>
    %137 = arith.truncf %136 : vector<8x128xf32> to vector<8x128xbf16>
    %c0_82 = arith.constant 0 : index
    %c0_83 = arith.constant 0 : index
    %138 = vector.load %arg5[%c0_82, %c0_83] : memref<128x128xbf16, #tpu.memory_space<vmem>>, vector<128x128xbf16>
    %cst_84 = arith.constant dense<0.000000e+00> : vector<8x128xf32>
    %139 = tpu.matmul %137, %138, %cst_84 {dimension_numbers = #tpu.dot_dimension_numbers<[1], [0], [0], [1], [0, 0, 1, 1], [], []>} : vector<8x128xbf16>, vector<128x128xbf16>, vector<8x128xf32> -> vector<8x128xf32>
    %140 = arith.addf %139, %129 : vector<8x128xf32>
    %141 = arith.addf %140, %10 : vector<8x128xf32>
    %142 = math.tanh %141 : vector<8x128xf32>
    %143 = arith.truncf %142 : vector<8x128xf32> to vector<8x128xbf16>
    %c0_85 = arith.constant 0 : index
    %c0_86 = arith.constant 0 : index
    %144 = vector.load %arg8[%c0_85, %c0_86] : memref<128x128xbf16, #tpu.memory_space<vmem>>, vector<128x128xbf16>
    %cst_87 = arith.constant dense<0.000000e+00> : vector<8x128xf32>
    %145 = tpu.matmul %143, %144, %cst_87 {dimension_numbers = #tpu.dot_dimension_numbers<[1], [0], [0], [1], [0, 0, 1, 1], [], []>} : vector<8x128xbf16>, vector<128x128xbf16>, vector<8x128xf32> -> vector<8x128xf32>
    %c0_88 = arith.constant 0 : index
    %c0_89 = arith.constant 0 : index
    %146 = vector.load %arg9[%c0_88, %c0_89] : memref<1x128xf32, #tpu.memory_space<vmem>>, vector<1x128xf32>
    %147 = vector.broadcast %146 : vector<1x128xf32> to vector<8x128xf32>
    %148 = arith.addf %145, %147 : vector<8x128xf32>
    %c0_90 = arith.constant 0 : index
    %c0_91 = arith.constant 0 : index
    %149 = vector.load %arg10[%c0_90, %c0_91] : memref<8x128xf32, #tpu.memory_space<vmem>>, vector<8x128xf32>
    tpu.vector_store %arg10[%c0_90, %c0_91], %148 {strides = array<i32>} : memref<8x128xf32, #tpu.memory_space<vmem>>, vector<8x128xf32>,
    %c0_92 = arith.constant 0 : index
    %c0_93 = arith.constant 0 : index
    %c0_94 = arith.constant 0 : index
    %150 = vector.load %arg11[%c0_92, %c0_93, %c0_94] : memref<2x8x128xf32, #tpu.memory_space<vmem>>, vector<1x8x128xf32>
    %151 = vector.shape_cast %150 : vector<1x8x128xf32> to vector<8x128xf32>
    %152 = vector.shape_cast %136 : vector<8x128xf32> to vector<1x8x128xf32>
    tpu.vector_store %arg11[%c0_92, %c0_93, %c0_94], %152 {strides = array<i32>} : memref<2x8x128xf32, #tpu.memory_space<vmem>>, vector<1x8x128xf32>,
    %c1_95 = arith.constant 1 : index
    %c0_96 = arith.constant 0 : index
    %c0_97 = arith.constant 0 : index
    %153 = vector.load %arg11[%c1_95, %c0_96, %c0_97] : memref<2x8x128xf32, #tpu.memory_space<vmem>>, vector<1x8x128xf32>
    %154 = vector.shape_cast %153 : vector<1x8x128xf32> to vector<8x128xf32>
    %155 = vector.shape_cast %142 : vector<8x128xf32> to vector<1x8x128xf32>
    tpu.vector_store %arg11[%c1_95, %c0_96, %c0_97], %155 {strides = array<i32>} : memref<2x8x128xf32, #tpu.memory_space<vmem>>, vector<1x8x128xf32>,
    return
  }
}

</mosaic_0001>

<llo_original>
// kernel: tpu_custom_call.1
$region0: #{tpu_custom_call.1}
  #allocation0 [shape = 'u32[]', space=smem, size = 0x4, offset = 0x4, fixed_abs, tag = 'smem constant byte address 0x4 - core index']
  #allocation1 [shape = 'u32[72,128]{1,0:T(1,128)}', space=vmem, size = 0x9000, scoped, tag = 'internal scratch']
  %s0 = inlined_call_operand.hbm [shape: bf16[8,8,128], index: 0, kind: input, shape index: {}]
  %s1 = inlined_call_operand.hbm [shape: f32[2,8,128], index: 1, kind: input, shape index: {}]
  %s2 = inlined_call_operand.hbm [shape: bf16[128,128], index: 2, kind: input, shape index: {}]
  %s3 = inlined_call_operand.hbm [shape: bf16[128,128], index: 3, kind: input, shape index: {}]
  %s4 = inlined_call_operand.vmem [shape: f32[1,128], index: 4, kind: input, shape index: {}]
  %s5 = inlined_call_operand.hbm [shape: bf16[128,128], index: 5, kind: input, shape index: {}]
  %s6 = inlined_call_operand.hbm [shape: bf16[128,128], index: 6, kind: input, shape index: {}]
  %s7 = inlined_call_operand.vmem [shape: f32[1,128], index: 7, kind: input, shape index: {}]
  %s8 = inlined_call_operand.hbm [shape: bf16[128,128], index: 8, kind: input, shape index: {}]
  %s9 = inlined_call_operand.vmem [shape: f32[1,128], index: 9, kind: input, shape index: {}]
  %s10 = inlined_call_operand.hbm [shape: f32[8,128], index: 10, kind: output, shape index: {0}]
  %s11 = inlined_call_operand.hbm [shape: f32[2,8,128], index: 11, kind: output, shape index: {1}]
  %12 = xla_tuple %s10, %s11
  %s13 = sld [smem:[#allocation0]]
  $region86: #{tpu_custom_call.1} parent=0
    _
  %s15 = ssub.s32 1, %s13
  %s16 = scalar_select 0, %s15, %s13
  $region1: #{tpu_custom_call.1} parent=0
    #allocation2 [shape = 'u8[16384]{0}', space=vmem, size = 0x4000, scoped, tag = 'input window, operand 0, single buffered']
    #allocation3 [shape = 's32[1]{0}', space=sflag, size = 0x4, scoped, tag = 'scoped memory for tpu_custom_call.1']
    #allocation4 [shape = 's32[1]{0}', space=sflag, size = 0x4, scoped, tag = 'scoped memory for tpu_custom_call.1']
    #allocation5 [shape = 'u8[8192]{0}', space=vmem, size = 0x2000, scoped, tag = 'input window, operand 1, single buffered']
    #allocation6 [shape = 's32[1]{0}', space=sflag, size = 0x4, scoped, tag = 'scoped memory for tpu_custom_call.1']
    #allocation7 [shape = 'u8[32768]{0}', space=vmem, size = 0x8000, scoped, tag = 'input window, operand 2, single buffered']
    #allocation8 [shape = 'u8[32768]{0}', space=vmem, size = 0x8000, scoped, tag = 'input window, operand 3, single buffered']
    #allocation9 [shape = 's32[1]{0}', space=sflag, size = 0x4, scoped, tag = 'scoped memory for tpu_custom_call.1']
    #allocation10 [shape = 'u8[32768]{0}', space=vmem, size = 0x8000, scoped, tag = 'input window, operand 5, single buffered']
    #allocation11 [shape = 'u8[32768]{0}', space=vmem, size = 0x8000, scoped, tag = 'input window, operand 6, single buffered']
    #allocation12 [shape = 's32[1]{0}', space=sflag, size = 0x4, scoped, tag = 'scoped memory for tpu_custom_call.1']
    #allocation13 [shape = 'u8[32768]{0}', space=vmem, size = 0x8000, scoped, tag = 'input window, operand 8, single buffered']
    #allocation14 [shape = 'u8[4096]{0}', space=vmem, size = 0x1000, scoped, tag = 'output window, operand 0, single buffered']
    #allocation15 [shape = 'u8[8192]{0}', space=vmem, size = 0x2000, scoped, tag = 'output window, operand 1, single buffered']
    #allocation16 [shape = 's32[1]{0}', space=sflag, size = 0x4, scoped, tag = 'scoped memory for tpu_custom_call.1']
    %17 = vsyncpa [#allocation3], 0
    %18 = vsyncpa [#allocation6], 0
    %19 = vsyncpa [#allocation9], 0
    %20 = vsyncpa [#allocation12], 0
    %21 = vsyncpa [#allocation4], 0
    %22 = vsyncpa [#allocation16], 0
    // Predicated region
    $region2: #{tpu_custom_call.1} parent=1 // pred_check
      _
    $region3: #{tpu_custom_call.1} parent=1 // pred_check_branch
      %24 = sbr.rel (0) target = $region5
    $region4: #{tpu_custom_call.1} parent=1 // pred_region
      %26 = vsyncadd [#allocation3], 0
      %s27 = sshll.u32 %s0, 4
      %s28 = int_to_ptr.hbm [resolvable:$true] %s27
      %s29 = sshll.u32 [#allocation2], 4
      %s30 = int_to_ptr.vmem [resolvable:$true] %s29
      %35 = dma.hbm_to_vmem [thread:$0]  %s28, 512, %s30, [#allocation3], 64, 64, 4
    $region5: #{tpu_custom_call.1} parent=1 // pred_fallthru
      _
    // Predicated region
    $region6: #{tpu_custom_call.1} parent=1 // pred_check
      _
    $region7: #{tpu_custom_call.1} parent=1 // pred_check_branch
      %37 = sbr.rel (0) target = $region9
    $region8: #{tpu_custom_call.1} parent=1 // pred_region
      %39 = vsyncadd [#allocation6], 0
      %s40 = sshll.u32 %s1, 4
      %s41 = int_to_ptr.hbm [resolvable:$true] %s40
      %s42 = sshll.u32 [#allocation5], 4
      %s43 = int_to_ptr.vmem [resolvable:$true] %s42
      %48 = dma.hbm_to_vmem [thread:$0]  %s41, 256, %s43, [#allocation6], 128, 128, 8
    $region9: #{tpu_custom_call.1} parent=1 // pred_fallthru
      _
    // Predicated region
    $region10: #{tpu_custom_call.1} parent=1 // pred_check
      _
    $region11: #{tpu_custom_call.1} parent=1 // pred_check_branch
      %50 = sbr.rel (0) target = $region13
    $region12: #{tpu_custom_call.1} parent=1 // pred_region
      %52 = vsyncadd [#allocation6], 0
      %s53 = sshll.u32 %s2, 4
      %s54 = int_to_ptr.hbm [resolvable:$true] %s53
      %s55 = sshll.u32 [#allocation7], 4
      %s56 = int_to_ptr.vmem [resolvable:$true] %s55
      %61 = dma.hbm_to_vmem [thread:$0]  %s54, 1024, %s56, [#allocation6], 64, 64, 4
    $region13: #{tpu_custom_call.1} parent=1 // pred_fallthru
      _
    // Predicated region
    $region14: #{tpu_custom_call.1} parent=1 // pred_check
      _
    $region15: #{tpu_custom_call.1} parent=1 // pred_check_branch
      %63 = sbr.rel (0) target = $region17
    $region16: #{tpu_custom_call.1} parent=1 // pred_region
      %65 = vsyncadd [#allocation9], 0
      %s66 = sshll.u32 %s3, 4
      %s67 = int_to_ptr.hbm [resolvable:$true] %s66
      %s68 = sshll.u32 [#allocation8], 4
      %s69 = int_to_ptr.vmem [resolvable:$true] %s68
      %74 = dma.hbm_to_vmem [thread:$0]  %s67, 1024, %s69, [#allocation9], 64, 64, 4
    $region17: #{tpu_custom_call.1} parent=1 // pred_fallthru
      _
    // Predicated region
    $region18: #{tpu_custom_call.1} parent=1 // pred_check
      _
    $region19: #{tpu_custom_call.1} parent=1 // pred_check_branch
      %76 = sbr.rel (0) target = $region21
    $region20: #{tpu_custom_call.1} parent=1 // pred_region
      _
    $region21: #{tpu_custom_call.1} parent=1 // pred_fallthru
      _
    // Predicated region
    $region22: #{tpu_custom_call.1} parent=1 // pred_check
      _
    $region23: #{tpu_custom_call.1} parent=1 // pred_check_branch
      %78 = sbr.rel (0) target = $region25
    $region24: #{tpu_custom_call.1} parent=1 // pred_region
      %80 = vsyncadd [#allocation9], 0
      %s81 = sshll.u32 %s5, 4
      %s82 = int_to_ptr.hbm [resolvable:$true] %s81
      %s83 = sshll.u32 [#allocation10], 4
      %s84 = int_to_ptr.vmem [resolvable:$true] %s83
      %89 = dma.hbm_to_vmem [thread:$0]  %s82, 1024, %s84, [#allocation9], 64, 64, 4
    $region25: #{tpu_custom_call.1} parent=1 // pred_fallthru
      _
    // Predicated region
    $region26: #{tpu_custom_call.1} parent=1 // pred_check
      _
    $region27: #{tpu_custom_call.1} parent=1 // pred_check_branch
      %91 = sbr.rel (0) target = $region29
    $region28: #{tpu_custom_call.1} parent=1 // pred_region
      %93 = vsyncadd [#allocation12], 0
      %s94 = sshll.u32 %s6, 4
      %s95 = int_to_ptr.hbm [resolvable:$true] %s94
      %s96 = sshll.u32 [#allocation11], 4
      %s97 = int_to_ptr.vmem [resolvable:$true] %s96
      %102 = dma.hbm_to_vmem [thread:$0]  %s95, 1024, %s97, [#allocation12], 64, 64, 4
    $region29: #{tpu_custom_call.1} parent=1 // pred_fallthru
      _
    // Predicated region
    $region30: #{tpu_custom_call.1} parent=1 // pred_check
      _
    $region31: #{tpu_custom_call.1} parent=1 // pred_check_branch
      %104 = sbr.rel (0) target = $region33
    $region32: #{tpu_custom_call.1} parent=1 // pred_region
      _
    $region33: #{tpu_custom_call.1} parent=1 // pred_fallthru
      _
    // Predicated region
    $region34: #{tpu_custom_call.1} parent=1 // pred_check
      _
    $region35: #{tpu_custom_call.1} parent=1 // pred_check_branch
      %106 = sbr.rel (0) target = $region37
    $region36: #{tpu_custom_call.1} parent=1 // pred_region
      %108 = vsyncadd [#allocation12], 0
      %s109 = sshll.u32 %s8, 4
      %s110 = int_to_ptr.hbm [resolvable:$true] %s109
      %s111 = sshll.u32 [#allocation13], 4
      %s112 = int_to_ptr.vmem [resolvable:$true] %s111
      %117 = dma.hbm_to_vmem [thread:$0]  %s110, 1024, %s112, [#allocation12], 64, 64, 4
    $region37: #{tpu_custom_call.1} parent=1 // pred_fallthru
      _
    // Predicated region
    $region38: #{tpu_custom_call.1} parent=1 // pred_check
      _
    $region39: #{tpu_custom_call.1} parent=1 // pred_check_branch
      %119 = sbr.rel (0) target = $region41
    $region40: #{tpu_custom_call.1} parent=1 // pred_region
      _
    $region41: #{tpu_custom_call.1} parent=1 // pred_fallthru
      _
    // Predicated region
    $region42: #{tpu_custom_call.1} parent=1 // pred_check
      _
    $region43: #{tpu_custom_call.1} parent=1 // pred_check_branch
      %121 = sbr.rel (0) target = $region45
    $region44: #{tpu_custom_call.1} parent=1 // pred_region
      %123 = dma.done [#allocation3], 512
    $region45: #{tpu_custom_call.1} parent=1 // pred_fallthru
      _
    // Predicated region
    $region46: #{tpu_custom_call.1} parent=1 // pred_check
      _
    $region47: #{tpu_custom_call.1} parent=1 // pred_check_branch
      %125 = sbr.rel (0) target = $region49
    $region48: #{tpu_custom_call.1} parent=1 // pred_region
      %127 = dma.done [#allocation6], 256
    $region49: #{tpu_custom_call.1} parent=1 // pred_fallthru
      _
    // Predicated region
    $region50: #{tpu_custom_call.1} parent=1 // pred_check
      _
    $region51: #{tpu_custom_call.1} parent=1 // pred_check_branch
      %129 = sbr.rel (0) target = $region53
    $region52: #{tpu_custom_call.1} parent=1 // pred_region
      %131 = dma.done [#allocation6], 1024
    $region53: #{tpu_custom_call.1} parent=1 // pred_fallthru
      _
    // Predicated region
    $region54: #{tpu_custom_call.1} parent=1 // pred_check
      _
    $region55: #{tpu_custom_call.1} parent=1 // pred_check_branch
      %133 = sbr.rel (0) target = $region57
    $region56: #{tpu_custom_call.1} parent=1 // pred_region
      %135 = dma.done [#allocation9], 1024
    $region57: #{tpu_custom_call.1} parent=1 // pred_fallthru
      _
    // Predicated region
    $region58: #{tpu_custom_call.1} parent=1 // pred_check
      _
    $region59: #{tpu_custom_call.1} parent=1 // pred_check_branch
      %137 = sbr.rel (0) target = $region61
    $region60: #{tpu_custom_call.1} parent=1 // pred_region
      %139 = dma.done [#allocation9], 1024
    $region61: #{tpu_custom_call.1} parent=1 // pred_fallthru
      _
    // Predicated region
    $region62: #{tpu_custom_call.1} parent=1 // pred_check
      _
    $region63: #{tpu_custom_call.1} parent=1 // pred_check_branch
      %141 = sbr.rel (0) target = $region65
    $region64: #{tpu_custom_call.1} parent=1 // pred_region
      %143 = dma.done [#allocation12], 1024
    $region65: #{tpu_custom_call.1} parent=1 // pred_fallthru
      _
    // Predicated region
    $region66: #{tpu_custom_call.1} parent=1 // pred_check
      _
    $region67: #{tpu_custom_call.1} parent=1 // pred_check_branch
      %145 = sbr.rel (0) target = $region69
    $region68: #{tpu_custom_call.1} parent=1 // pred_region
      %147 = dma.done [#allocation12], 1024
    $region69: #{tpu_custom_call.1} parent=1 // pred_fallthru
      _
    %v148 = vld [vmem:[#allocation2] sm:$0xf]
    %v149 = vld [vmem:[#allocation2 + $0x4] sm:$0xf]
    %v150 = vld [vmem:[#allocation2 + $0x8] sm:$0xf]
    %v151 = vld [vmem:[#allocation2 + $0xc] sm:$0xf]
    %v152 = vld [vmem:[#allocation2 + $0x10] sm:$0xf]
    %v153 = vld [vmem:[#allocation2 + $0x14] sm:$0xf]
    %v154 = vld [vmem:[#allocation2 + $0x18] sm:$0xf]
    %v155 = vld [vmem:[#allocation2 + $0x1c] sm:$0xf]
    %v156 = vld [vmem:[#allocation7] sm:$0xf]
    %v157 = vld [vmem:[#allocation7 + $0x4] sm:$0xf]
    %v158 = vld [vmem:[#allocation7 + $0x8] sm:$0xf]
    %v159 = vld [vmem:[#allocation7 + $0xc] sm:$0xf]
    %v160 = vld [vmem:[#allocation7 + $0x10] sm:$0xf]
    %v161 = vld [vmem:[#allocation7 + $0x14] sm:$0xf]
    %v162 = vld [vmem:[#allocation7 + $0x18] sm:$0xf]
    %v163 = vld [vmem:[#allocation7 + $0x1c] sm:$0xf]
    %v164 = vld [vmem:[#allocation7 + $0x20] sm:$0xf]
    %v165 = vld [vmem:[#allocation7 + $0x24] sm:$0xf]
    %v166 = vld [vmem:[#allocation7 + $0x28] sm:$0xf]
    %v167 = vld [vmem:[#allocation7 + $0x2c] sm:$0xf]
    %v168 = vld [vmem:[#allocation7 + $0x30] sm:$0xf]
    %v169 = vld [vmem:[#allocation7 + $0x34] sm:$0xf]
    %v170 = vld [vmem:[#allocation7 + $0x38] sm:$0xf]
    %v171 = vld [vmem:[#allocation7 + $0x3c] sm:$0xf]
    %v172 = vld [vmem:[%s4] sm:$0x1]
    %v174 = vperm.slane %v172, 0
    %v184 = vunpack.c.l.b16 %v148
    %v185 = vunpack.c.l.b16 %v149
    %v186 = vunpack.c.l.b16 %v150
    %v187 = vunpack.c.l.b16 %v151
    %v188 = vunpack.c.l.b16 %v152
    %v189 = vunpack.c.l.b16 %v153
    %v190 = vunpack.c.l.b16 %v154
    %v191 = vunpack.c.l.b16 %v155
    %v192 = vpack.c.b16 %v185, %v184
    %v193 = vpack.c.b16 %v187, %v186
    %v194 = vpack.c.b16 %v189, %v188
    %v195 = vpack.c.b16 %v191, %v190
    %v216 = vunpack.c.l.b16 %v156
    %v217 = vunpack.c.l.b16 %v157
    %v218 = vunpack.c.l.b16 %v158
    %v219 = vunpack.c.l.b16 %v159
    %v220 = vunpack.c.l.b16 %v160
    %v221 = vunpack.c.l.b16 %v161
    %v222 = vunpack.c.l.b16 %v162
    %v223 = vunpack.c.l.b16 %v163
    %v224 = vunpack.c.l.b16 %v164
    %v225 = vunpack.c.l.b16 %v165
    %v226 = vunpack.c.l.b16 %v166
    %v227 = vunpack.c.l.b16 %v167
    %v228 = vunpack.c.l.b16 %v168
    %v229 = vunpack.c.l.b16 %v169
    %v230 = vunpack.c.l.b16 %v170
    %v231 = vunpack.c.l.b16 %v171
    %v232 = vpack.c.b16 %v217, %v216
    %v233 = vpack.c.b16 %v219, %v218
    %v234 = vpack.c.b16 %v221, %v220
    %v235 = vpack.c.b16 %v223, %v222
    %v236 = vpack.c.b16 %v225, %v224
    %v237 = vpack.c.b16 %v227, %v226
    %v238 = vpack.c.b16 %v229, %v228
    %v239 = vpack.c.b16 %v231, %v230
    %248 = vmatpush.bf16.msra.mxu0 %v239
    %249 = vmatpush.bf16.msra.mxu0 %v238
    %250 = vmatpush.bf16.msra.mxu0 %v237
    %251 = vmatpush.bf16.msra.mxu0 %v236
    %252 = vmatpush.bf16.msra.mxu0 %v235
    %253 = vmatpush.bf16.msra.mxu0 %v234
    %254 = vmatpush.bf16.msra.mxu0 %v233
    %255 = vmatpush.bf16.msra.mxu0 %v232
    %256 = vmatmul.bf16.gmra.mxu0 %v192
    %v257 = vpop.f32.mrf.mxu0
    %v258 = vadd.f32 %v174, %v257
    %v259 = vpop.f32.mrf.mxu0
    %v260 = vadd.f32 %v174, %v259
    %261 = vmatmul.bf16.gmra.mxu0 %v193
    %v262 = vpop.f32.mrf.mxu0
    %v263 = vadd.f32 %v174, %v262
    %v264 = vpop.f32.mrf.mxu0
    %v265 = vadd.f32 %v174, %v264
    %266 = vmatmul.bf16.gmra.mxu0 %v194
    %v267 = vpop.f32.mrf.mxu0
    %v268 = vadd.f32 %v174, %v267
    %v269 = vpop.f32.mrf.mxu0
    %v270 = vadd.f32 %v174, %v269
    %271 = vmatmul.bf16.gmra.mxu0 %v195
    %v272 = vpop.f32.mrf.mxu0
    %v273 = vadd.f32 %v174, %v272
    %v274 = vpop.f32.mrf.mxu0
    %v275 = vadd.f32 %v174, %v274
    %276 = vdwg.mxu0
    %v277 = vld [vmem:[%s7] sm:$0x1]
    %v279 = vperm.slane %v277, 0
    %v281 = vld [vmem:[#allocation5] sm:$0xff]
    %s282 = scalar_lea.vmem [#allocation5], 8
    %v283 = vld [vmem:[%s282] sm:$0xff]
    %v284 = vpack.c.bf16 %v283, %v283
    %v285 = vld [vmem:[#allocation11] sm:$0xf]
    %v286 = vld [vmem:[#allocation11 + $0x4] sm:$0xf]
    %v287 = vld [vmem:[#allocation11 + $0x8] sm:$0xf]
    %v288 = vld [vmem:[#allocation11 + $0xc] sm:$0xf]
    %v289 = vld [vmem:[#allocation11 + $0x10] sm:$0xf]
    %v290 = vld [vmem:[#allocation11 + $0x14] sm:$0xf]
    %v291 = vld [vmem:[#allocation11 + $0x18] sm:$0xf]
    %v292 = vld [vmem:[#allocation11 + $0x1c] sm:$0xf]
    %v293 = vld [vmem:[#allocation11 + $0x20] sm:$0xf]
    %v294 = vld [vmem:[#allocation11 + $0x24] sm:$0xf]
    %v295 = vld [vmem:[#allocation11 + $0x28] sm:$0xf]
    %v296 = vld [vmem:[#allocation11 + $0x2c] sm:$0xf]
    %v297 = vld [vmem:[#allocation11 + $0x30] sm:$0xf]
    %v298 = vld [vmem:[#allocation11 + $0x34] sm:$0xf]
    %v299 = vld [vmem:[#allocation11 + $0x38] sm:$0xf]
    %v300 = vld [vmem:[#allocation11 + $0x3c] sm:$0xf]
    %v317 = vunpack.c.l.b16 %v285
    %v318 = vunpack.c.l.b16 %v286
    %v319 = vunpack.c.l.b16 %v287
    %v320 = vunpack.c.l.b16 %v288
    %v321 = vunpack.c.l.b16 %v289
    %v322 = vunpack.c.l.b16 %v290
    %v323 = vunpack.c.l.b16 %v291
    %v324 = vunpack.c.l.b16 %v292
    %v325 = vunpack.c.l.b16 %v293
    %v326 = vunpack.c.l.b16 %v294
    %v327 = vunpack.c.l.b16 %v295
    %v328 = vunpack.c.l.b16 %v296
    %v329 = vunpack.c.l.b16 %v297
    %v330 = vunpack.c.l.b16 %v298
    %v331 = vunpack.c.l.b16 %v299
    %v332 = vunpack.c.l.b16 %v300
    %v333 = vpack.c.b16 %v318, %v317
    %v334 = vpack.c.b16 %v320, %v319
    %v335 = vpack.c.b16 %v322, %v321
    %v336 = vpack.c.b16 %v324, %v323
    %v337 = vpack.c.b16 %v326, %v325
    %v338 = vpack.c.b16 %v328, %v327
    %v339 = vpack.c.b16 %v330, %v329
    %v340 = vpack.c.b16 %v332, %v331
    %349 = vmatpush.bf16.msra.mxu0 %v340
    %350 = vmatpush.bf16.msra.mxu0 %v339
    %351 = vmatpush.bf16.msra.mxu0 %v338
    %352 = vmatpush.bf16.msra.mxu0 %v337
    %353 = vmatpush.bf16.msra.mxu0 %v336
    %354 = vmatpush.bf16.msra.mxu0 %v335
    %355 = vmatpush.bf16.msra.mxu0 %v334
    %356 = vmatpush.bf16.msra.mxu0 %v333
    %357 = vmatmul.bf16.gmra.mxu0 %v284
    %v358 = vpop.f32.mrf.mxu0
    %v359 = vadd.f32 0.0, %v358
    %v360 = vpop.f32.mrf.mxu0
    %361 = vdwg.mxu0
    %v362 = vpack.c.bf16 %v281, %v281
    %v363 = vld [vmem:[#allocation8] sm:$0xf]
    %v364 = vld [vmem:[#allocation8 + $0x4] sm:$0xf]
    %v365 = vld [vmem:[#allocation8 + $0x8] sm:$0xf]
    %v366 = vld [vmem:[#allocation8 + $0xc] sm:$0xf]
    %v367 = vld [vmem:[#allocation8 + $0x10] sm:$0xf]
    %v368 = vld [vmem:[#allocation8 + $0x14] sm:$0xf]
    %v369 = vld [vmem:[#allocation8 + $0x18] sm:$0xf]
    %v370 = vld [vmem:[#allocation8 + $0x1c] sm:$0xf]
    %v371 = vld [vmem:[#allocation8 + $0x20] sm:$0xf]
    %v372 = vld [vmem:[#allocation8 + $0x24] sm:$0xf]
    %v373 = vld [vmem:[#allocation8 + $0x28] sm:$0xf]
    %v374 = vld [vmem:[#allocation8 + $0x2c] sm:$0xf]
    %v375 = vld [vmem:[#allocation8 + $0x30] sm:$0xf]
    %v376 = vld [vmem:[#allocation8 + $0x34] sm:$0xf]
    %v377 = vld [vmem:[#allocation8 + $0x38] sm:$0xf]
    %v378 = vld [vmem:[#allocation8 + $0x3c] sm:$0xf]
    %v395 = vunpack.c.l.b16 %v363
    %v396 = vunpack.c.l.b16 %v364
    %v397 = vunpack.c.l.b16 %v365
    %v398 = vunpack.c.l.b16 %v366
    %v399 = vunpack.c.l.b16 %v367
    %v400 = vunpack.c.l.b16 %v368
    %v401 = vunpack.c.l.b16 %v369
    %v402 = vunpack.c.l.b16 %v370
    %v403 = vunpack.c.l.b16 %v371
    %v404 = vunpack.c.l.b16 %v372
    %v405 = vunpack.c.l.b16 %v373
    %v406 = vunpack.c.l.b16 %v374
    %v407 = vunpack.c.l.b16 %v375
    %v408 = vunpack.c.l.b16 %v376
    %v409 = vunpack.c.l.b16 %v377
    %v410 = vunpack.c.l.b16 %v378
    %v411 = vpack.c.b16 %v396, %v395
    %v412 = vpack.c.b16 %v398, %v397
    %v413 = vpack.c.b16 %v400, %v399
    %v414 = vpack.c.b16 %v402, %v401
    %v415 = vpack.c.b16 %v404, %v403
    %v416 = vpack.c.b16 %v406, %v405
    %v417 = vpack.c.b16 %v408, %v407
    %v418 = vpack.c.b16 %v410, %v409
    %427 = vmatpush.bf16.msra.mxu0 %v418
    %428 = vmatpush.bf16.msra.mxu0 %v417
    %429 = vmatpush.bf16.msra.mxu0 %v416
    %430 = vmatpush.bf16.msra.mxu0 %v415
    %431 = vmatpush.bf16.msra.mxu0 %v414
    %432 = vmatpush.bf16.msra.mxu0 %v413
    %433 = vmatpush.bf16.msra.mxu0 %v412
    %434 = vmatpush.bf16.msra.mxu0 %v411
    %435 = vmatmul.bf16.gmra.mxu0 %v362
    %v436 = vpop.f32.mrf.mxu0
    %v437 = vadd.f32 0.0, %v436
    %v438 = vpop.f32.mrf.mxu0
    %439 = vdwg.mxu0
    %v440 = vadd.f32 %v258, %v437
    %v441 = vtanh.pop %v440
    %v442 = vpack.c.bf16 %v441, %v441
    %v443 = vld [vmem:[#allocation10] sm:$0xf]
    %v444 = vld [vmem:[#allocation10 + $0x4] sm:$0xf]
    %v445 = vld [vmem:[#allocation10 + $0x8] sm:$0xf]
    %v446 = vld [vmem:[#allocation10 + $0xc] sm:$0xf]
    %v447 = vld [vmem:[#allocation10 + $0x10] sm:$0xf]
    %v448 = vld [vmem:[#allocation10 + $0x14] sm:$0xf]
    %v449 = vld [vmem:[#allocation10 + $0x18] sm:$0xf]
    %v450 = vld [vmem:[#allocation10 + $0x1c] sm:$0xf]
    %v451 = vld [vmem:[#allocation10 + $0x20] sm:$0xf]
    %v452 = vld [vmem:[#allocation10 + $0x24] sm:$0xf]
    %v453 = vld [vmem:[#allocation10 + $0x28] sm:$0xf]
    %v454 = vld [vmem:[#allocation10 + $0x2c] sm:$0xf]
    %v455 = vld [vmem:[#allocation10 + $0x30] sm:$0xf]
    %v456 = vld [vmem:[#allocation10 + $0x34] sm:$0xf]
    %v457 = vld [vmem:[#allocation10 + $0x38] sm:$0xf]
    %v458 = vld [vmem:[#allocation10 + $0x3c] sm:$0xf]
    %v475 = vunpack.c.l.b16 %v443
    %v476 = vunpack.c.l.b16 %v444
    %v477 = vunpack.c.l.b16 %v445
    %v478 = vunpack.c.l.b16 %v446
    %v479 = vunpack.c.l.b16 %v447
    %v480 = vunpack.c.l.b16 %v448
    %v481 = vunpack.c.l.b16 %v449
    %v482 = vunpack.c.l.b16 %v450
    %v483 = vunpack.c.l.b16 %v451
    %v484 = vunpack.c.l.b16 %v452
    %v485 = vunpack.c.l.b16 %v453
    %v486 = vunpack.c.l.b16 %v454
    %v487 = vunpack.c.l.b16 %v455
    %v488 = vunpack.c.l.b16 %v456
    %v489 = vunpack.c.l.b16 %v457
    %v490 = vunpack.c.l.b16 %v458
    %v491 = vpack.c.b16 %v476, %v475
    %v492 = vpack.c.b16 %v478, %v477
    %v493 = vpack.c.b16 %v480, %v479
    %v494 = vpack.c.b16 %v482, %v481
    %v495 = vpack.c.b16 %v484, %v483
    %v496 = vpack.c.b16 %v486, %v485
    %v497 = vpack.c.b16 %v488, %v487
    %v498 = vpack.c.b16 %v490, %v489
    %507 = vmatpush.bf16.msra.mxu0 %v498
    %508 = vmatpush.bf16.msra.mxu0 %v497
    %509 = vmatpush.bf16.msra.mxu0 %v496
    %510 = vmatpush.bf16.msra.mxu0 %v495
    %511 = vmatpush.bf16.msra.mxu0 %v494
    %512 = vmatpush.bf16.msra.mxu0 %v493
    %513 = vmatpush.bf16.msra.mxu0 %v492
    %514 = vmatpush.bf16.msra.mxu0 %v491
    %515 = vmatmul.bf16.gmra.mxu0 %v442
    %v516 = vpop.f32.mrf.mxu0
    %v517 = vadd.f32 %v359, %v516
    %v518 = vpop.f32.mrf.mxu0
    %519 = vdwg.mxu0
    %v520 = vadd.f32 %v517, %v279
    %v521 = vtanh.pop %v520
    %v522 = vpack.c.bf16 %v521, %v521
    %523 = vmatpush.bf16.msra.mxu0 %v340
    %524 = vmatpush.bf16.msra.mxu0 %v339
    %525 = vmatpush.bf16.msra.mxu0 %v338
    %526 = vmatpush.bf16.msra.mxu0 %v337
    %527 = vmatpush.bf16.msra.mxu0 %v336
    %528 = vmatpush.bf16.msra.mxu0 %v335
    %529 = vmatpush.bf16.msra.mxu0 %v334
    %530 = vmatpush.bf16.msra.mxu0 %v333
    %531 = vmatmul.bf16.gmra.mxu0 %v522
    %v532 = vpop.f32.mrf.mxu0
    %v533 = vadd.f32 0.0, %v532
    %v534 = vpop.f32.mrf.mxu0
    %535 = vdwg.mxu0
    %536 = vmatpush.bf16.msra.mxu0 %v418
    %537 = vmatpush.bf16.msra.mxu0 %v417
    %538 = vmatpush.bf16.msra.mxu0 %v416
    %539 = vmatpush.bf16.msra.mxu0 %v415
    %540 = vmatpush.bf16.msra.mxu0 %v414
    %541 = vmatpush.bf16.msra.mxu0 %v413
    %542 = vmatpush.bf16.msra.mxu0 %v412
    %543 = vmatpush.bf16.msra.mxu0 %v411
    %544 = vmatmul.bf16.gmra.mxu0 %v442
    %v545 = vpop.f32.mrf.mxu0
    %v546 = vadd.f32 0.0, %v545
    %v547 = vpop.f32.mrf.mxu0
    %548 = vdwg.mxu0
    %v549 = vadd.f32 %v260, %v546
    %v550 = vtanh.pop %v549
    %v551 = vpack.c.bf16 %v550, %v550
    %552 = vmatpush.bf16.msra.mxu0 %v498
    %553 = vmatpush.bf16.msra.mxu0 %v497
    %554 = vmatpush.bf16.msra.mxu0 %v496
    %555 = vmatpush.bf16.msra.mxu0 %v495
    %556 = vmatpush.bf16.msra.mxu0 %v494
    %557 = vmatpush.bf16.msra.mxu0 %v493
    %558 = vmatpush.bf16.msra.mxu0 %v492
    %559 = vmatpush.bf16.msra.mxu0 %v491
    %560 = vmatmul.bf16.gmra.mxu0 %v551
    %v561 = vpop.f32.mrf.mxu0
    %v562 = vadd.f32 %v533, %v561
    %v563 = vpop.f32.mrf.mxu0
    %564 = vdwg.mxu0
    %v565 = vadd.f32 %v562, %v279
    %v566 = vtanh.pop %v565
    %v567 = vpack.c.bf16 %v566, %v566
    %568 = vmatpush.bf16.msra.mxu0 %v340
    %569 = vmatpush.bf16.msra.mxu0 %v339
    %570 = vmatpush.bf16.msra.mxu0 %v338
    %571 = vmatpush.bf16.msra.mxu0 %v337
    %572 = vmatpush.bf16.msra.mxu0 %v336
    %573 = vmatpush.bf16.msra.mxu0 %v335
    %574 = vmatpush.bf16.msra.mxu0 %v334
    %575 = vmatpush.bf16.msra.mxu0 %v333
    %576 = vmatmul.bf16.gmra.mxu0 %v567
    %v577 = vpop.f32.mrf.mxu0
    %v578 = vadd.f32 0.0, %v577
    %v579 = vpop.f32.mrf.mxu0
    %580 = vdwg.mxu0
    %581 = vmatpush.bf16.msra.mxu0 %v418
    %582 = vmatpush.bf16.msra.mxu0 %v417
    %583 = vmatpush.bf16.msra.mxu0 %v416
    %584 = vmatpush.bf16.msra.mxu0 %v415
    %585 = vmatpush.bf16.msra.mxu0 %v414
    %586 = vmatpush.bf16.msra.mxu0 %v413
    %587 = vmatpush.bf16.msra.mxu0 %v412
    %588 = vmatpush.bf16.msra.mxu0 %v411
    %589 = vmatmul.bf16.gmra.mxu0 %v551
    %v590 = vpop.f32.mrf.mxu0
    %v591 = vadd.f32 0.0, %v590
    %v592 = vpop.f32.mrf.mxu0
    %593 = vdwg.mxu0
    %v594 = vadd.f32 %v263, %v591
    %v595 = vtanh.pop %v594
    %v596 = vpack.c.bf16 %v595, %v595
    %597 = vmatpush.bf16.msra.mxu0 %v498
    %598 = vmatpush.bf16.msra.mxu0 %v497
    %599 = vmatpush.bf16.msra.mxu0 %v496
    %600 = vmatpush.bf16.msra.mxu0 %v495
    %601 = vmatpush.bf16.msra.mxu0 %v494
    %602 = vmatpush.bf16.msra.mxu0 %v493
    %603 = vmatpush.bf16.msra.mxu0 %v492
    %604 = vmatpush.bf16.msra.mxu0 %v491
    %605 = vmatmul.bf16.gmra.mxu0 %v596
    %v606 = vpop.f32.mrf.mxu0
    %v607 = vadd.f32 %v578, %v606
    %v608 = vpop.f32.mrf.mxu0
    %609 = vdwg.mxu0
    %v610 = vadd.f32 %v607, %v279
    %v611 = vtanh.pop %v610
    %v612 = vpack.c.bf16 %v611, %v611
    %613 = vmatpush.bf16.msra.mxu0 %v340
    %614 = vmatpush.bf16.msra.mxu0 %v339
    %615 = vmatpush.bf16.msra.mxu0 %v338
    %616 = vmatpush.bf16.msra.mxu0 %v337
    %617 = vmatpush.bf16.msra.mxu0 %v336
    %618 = vmatpush.bf16.msra.mxu0 %v335
    %619 = vmatpush.bf16.msra.mxu0 %v334
    %620 = vmatpush.bf16.msra.mxu0 %v333
    %621 = vmatmul.bf16.gmra.mxu0 %v612
    %v622 = vpop.f32.mrf.mxu0
    %v623 = vadd.f32 0.0, %v622
    %v624 = vpop.f32.mrf.mxu0
    %625 = vdwg.mxu0
    %626 = vmatpush.bf16.msra.mxu0 %v418
    %627 = vmatpush.bf16.msra.mxu0 %v417
    %628 = vmatpush.bf16.msra.mxu0 %v416
    %629 = vmatpush.bf16.msra.mxu0 %v415
    %630 = vmatpush.bf16.msra.mxu0 %v414
    %631 = vmatpush.bf16.msra.mxu0 %v413
    %632 = vmatpush.bf16.msra.mxu0 %v412
    %633 = vmatpush.bf16.msra.mxu0 %v411
    %634 = vmatmul.bf16.gmra.mxu0 %v596
    %v635 = vpop.f32.mrf.mxu0
    %v636 = vadd.f32 0.0, %v635
    %v637 = vpop.f32.mrf.mxu0
    %638 = vdwg.mxu0
    %v639 = vadd.f32 %v265, %v636
    %v640 = vtanh.pop %v639
    %v641 = vpack.c.bf16 %v640, %v640
    %642 = vmatpush.bf16.msra.mxu0 %v498
    %643 = vmatpush.bf16.msra.mxu0 %v497
    %644 = vmatpush.bf16.msra.mxu0 %v496
    %645 = vmatpush.bf16.msra.mxu0 %v495
    %646 = vmatpush.bf16.msra.mxu0 %v494
    %647 = vmatpush.bf16.msra.mxu0 %v493
    %648 = vmatpush.bf16.msra.mxu0 %v492
    %649 = vmatpush.bf16.msra.mxu0 %v491
    %650 = vmatmul.bf16.gmra.mxu0 %v641
    %v651 = vpop.f32.mrf.mxu0
    %v652 = vadd.f32 %v623, %v651
    %v653 = vpop.f32.mrf.mxu0
    %654 = vdwg.mxu0
    %v655 = vadd.f32 %v652, %v279
    %v656 = vtanh.pop %v655
    %v657 = vpack.c.bf16 %v656, %v656
    %658 = vmatpush.bf16.msra.mxu0 %v340
    %659 = vmatpush.bf16.msra.mxu0 %v339
    %660 = vmatpush.bf16.msra.mxu0 %v338
    %661 = vmatpush.bf16.msra.mxu0 %v337
    %662 = vmatpush.bf16.msra.mxu0 %v336
    %663 = vmatpush.bf16.msra.mxu0 %v335
    %664 = vmatpush.bf16.msra.mxu0 %v334
    %665 = vmatpush.bf16.msra.mxu0 %v333
    %666 = vmatmul.bf16.gmra.mxu0 %v657
    %v667 = vpop.f32.mrf.mxu0
    %v668 = vadd.f32 0.0, %v667
    %v669 = vpop.f32.mrf.mxu0
    %670 = vdwg.mxu0
    %671 = vmatpush.bf16.msra.mxu0 %v418
    %672 = vmatpush.bf16.msra.mxu0 %v417
    %673 = vmatpush.bf16.msra.mxu0 %v416
    %674 = vmatpush.bf16.msra.mxu0 %v415
    %675 = vmatpush.bf16.msra.mxu0 %v414
    %676 = vmatpush.bf16.msra.mxu0 %v413
    %677 = vmatpush.bf16.msra.mxu0 %v412
    %678 = vmatpush.bf16.msra.mxu0 %v411
    %679 = vmatmul.bf16.gmra.mxu0 %v641
    %v680 = vpop.f32.mrf.mxu0
    %v681 = vadd.f32 0.0, %v680
    %v682 = vpop.f32.mrf.mxu0
    %683 = vdwg.mxu0
    %v684 = vadd.f32 %v268, %v681
    %v685 = vtanh.pop %v684
    %v686 = vpack.c.bf16 %v685, %v685
    %687 = vmatpush.bf16.msra.mxu0 %v498
    %688 = vmatpush.bf16.msra.mxu0 %v497
    %689 = vmatpush.bf16.msra.mxu0 %v496
    %690 = vmatpush.bf16.msra.mxu0 %v495
    %691 = vmatpush.bf16.msra.mxu0 %v494
    %692 = vmatpush.bf16.msra.mxu0 %v493
    %693 = vmatpush.bf16.msra.mxu0 %v492
    %694 = vmatpush.bf16.msra.mxu0 %v491
    %695 = vmatmul.bf16.gmra.mxu0 %v686
    %v696 = vpop.f32.mrf.mxu0
    %v697 = vadd.f32 %v668, %v696
    %v698 = vpop.f32.mrf.mxu0
    %699 = vdwg.mxu0
    %v700 = vadd.f32 %v697, %v279
    %v701 = vtanh.pop %v700
    %v702 = vpack.c.bf16 %v701, %v701
    %703 = vmatpush.bf16.msra.mxu0 %v340
    %704 = vmatpush.bf16.msra.mxu0 %v339
    %705 = vmatpush.bf16.msra.mxu0 %v338
    %706 = vmatpush.bf16.msra.mxu0 %v337
    %707 = vmatpush.bf16.msra.mxu0 %v336
    %708 = vmatpush.bf16.msra.mxu0 %v335
    %709 = vmatpush.bf16.msra.mxu0 %v334
    %710 = vmatpush.bf16.msra.mxu0 %v333
    %711 = vmatmul.bf16.gmra.mxu0 %v702
    %v712 = vpop.f32.mrf.mxu0
    %v713 = vadd.f32 0.0, %v712
    %v714 = vpop.f32.mrf.mxu0
    %715 = vdwg.mxu0
    %716 = vmatpush.bf16.msra.mxu0 %v418
    %717 = vmatpush.bf16.msra.mxu0 %v417
    %718 = vmatpush.bf16.msra.mxu0 %v416
    %719 = vmatpush.bf16.msra.mxu0 %v415
    %720 = vmatpush.bf16.msra.mxu0 %v414
    %721 = vmatpush.bf16.msra.mxu0 %v413
    %722 = vmatpush.bf16.msra.mxu0 %v412
    %723 = vmatpush.bf16.msra.mxu0 %v411
    %724 = vmatmul.bf16.gmra.mxu0 %v686
    %v725 = vpop.f32.mrf.mxu0
    %v726 = vadd.f32 0.0, %v725
    %v727 = vpop.f32.mrf.mxu0
    %728 = vdwg.mxu0
    %v729 = vadd.f32 %v270, %v726
    %v730 = vtanh.pop %v729
    %v731 = vpack.c.bf16 %v730, %v730
    %732 = vmatpush.bf16.msra.mxu0 %v498
    %733 = vmatpush.bf16.msra.mxu0 %v497
    %734 = vmatpush.bf16.msra.mxu0 %v496
    %735 = vmatpush.bf16.msra.mxu0 %v495
    %736 = vmatpush.bf16.msra.mxu0 %v494
    %737 = vmatpush.bf16.msra.mxu0 %v493
    %738 = vmatpush.bf16.msra.mxu0 %v492
    %739 = vmatpush.bf16.msra.mxu0 %v491
    %740 = vmatmul.bf16.gmra.mxu0 %v731
    %v741 = vpop.f32.mrf.mxu0
    %v742 = vadd.f32 %v713, %v741
    %v743 = vpop.f32.mrf.mxu0
    %744 = vdwg.mxu0
    %v745 = vadd.f32 %v742, %v279
    %v746 = vtanh.pop %v745
    %v747 = vpack.c.bf16 %v746, %v746
    %748 = vmatpush.bf16.msra.mxu0 %v340
    %749 = vmatpush.bf16.msra.mxu0 %v339
    %750 = vmatpush.bf16.msra.mxu0 %v338
    %751 = vmatpush.bf16.msra.mxu0 %v337
    %752 = vmatpush.bf16.msra.mxu0 %v336
    %753 = vmatpush.bf16.msra.mxu0 %v335
    %754 = vmatpush.bf16.msra.mxu0 %v334
    %755 = vmatpush.bf16.msra.mxu0 %v333
    %756 = vmatmul.bf16.gmra.mxu0 %v747
    %v757 = vpop.f32.mrf.mxu0
    %v758 = vadd.f32 0.0, %v757
    %v759 = vpop.f32.mrf.mxu0
    %760 = vdwg.mxu0
    %761 = vmatpush.bf16.msra.mxu0 %v418
    %762 = vmatpush.bf16.msra.mxu0 %v417
    %763 = vmatpush.bf16.msra.mxu0 %v416
    %764 = vmatpush.bf16.msra.mxu0 %v415
    %765 = vmatpush.bf16.msra.mxu0 %v414
    %766 = vmatpush.bf16.msra.mxu0 %v413
    %767 = vmatpush.bf16.msra.mxu0 %v412
    %768 = vmatpush.bf16.msra.mxu0 %v411
    %769 = vmatmul.bf16.gmra.mxu0 %v731
    %v770 = vpop.f32.mrf.mxu0
    %v771 = vadd.f32 0.0, %v770
    %v772 = vpop.f32.mrf.mxu0
    %773 = vdwg.mxu0
    %v774 = vadd.f32 %v273, %v771
    %v775 = vtanh.pop %v774
    %v776 = vpack.c.bf16 %v775, %v775
    %777 = vmatpush.bf16.msra.mxu0 %v498
    %778 = vmatpush.bf16.msra.mxu0 %v497
    %779 = vmatpush.bf16.msra.mxu0 %v496
    %780 = vmatpush.bf16.msra.mxu0 %v495
    %781 = vmatpush.bf16.msra.mxu0 %v494
    %782 = vmatpush.bf16.msra.mxu0 %v493
    %783 = vmatpush.bf16.msra.mxu0 %v492
    %784 = vmatpush.bf16.msra.mxu0 %v491
    %785 = vmatmul.bf16.gmra.mxu0 %v776
    %v786 = vpop.f32.mrf.mxu0
    %v787 = vadd.f32 %v758, %v786
    %v788 = vpop.f32.mrf.mxu0
    %789 = vdwg.mxu0
    %v790 = vadd.f32 %v787, %v279
    %v791 = vtanh.pop %v790
    %v792 = vpack.c.bf16 %v791, %v791
    %793 = vmatpush.bf16.msra.mxu0 %v340
    %794 = vmatpush.bf16.msra.mxu0 %v339
    %795 = vmatpush.bf16.msra.mxu0 %v338
    %796 = vmatpush.bf16.msra.mxu0 %v337
    %797 = vmatpush.bf16.msra.mxu0 %v336
    %798 = vmatpush.bf16.msra.mxu0 %v335
    %799 = vmatpush.bf16.msra.mxu0 %v334
    %800 = vmatpush.bf16.msra.mxu0 %v333
    %801 = vmatmul.bf16.gmra.mxu0 %v792
    %v802 = vpop.f32.mrf.mxu0
    %v803 = vadd.f32 0.0, %v802
    %v804 = vpop.f32.mrf.mxu0
    %805 = vdwg.mxu0
    %806 = vmatpush.bf16.msra.mxu0 %v418
    %807 = vmatpush.bf16.msra.mxu0 %v417
    %808 = vmatpush.bf16.msra.mxu0 %v416
    %809 = vmatpush.bf16.msra.mxu0 %v415
    %810 = vmatpush.bf16.msra.mxu0 %v414
    %811 = vmatpush.bf16.msra.mxu0 %v413
    %812 = vmatpush.bf16.msra.mxu0 %v412
    %813 = vmatpush.bf16.msra.mxu0 %v411
    %814 = vmatmul.bf16.gmra.mxu0 %v776
    %v815 = vpop.f32.mrf.mxu0
    %v816 = vadd.f32 0.0, %v815
    %v817 = vpop.f32.mrf.mxu0
    %818 = vdwg.mxu0
    %v819 = vadd.f32 %v275, %v816
    %v820 = vtanh.pop %v819
    %v821 = vpack.c.bf16 %v820, %v820
    %822 = vmatpush.bf16.msra.mxu0 %v498
    %823 = vmatpush.bf16.msra.mxu0 %v497
    %824 = vmatpush.bf16.msra.mxu0 %v496
    %825 = vmatpush.bf16.msra.mxu0 %v495
    %826 = vmatpush.bf16.msra.mxu0 %v494
    %827 = vmatpush.bf16.msra.mxu0 %v493
    %828 = vmatpush.bf16.msra.mxu0 %v492
    %829 = vmatpush.bf16.msra.mxu0 %v491
    %830 = vmatmul.bf16.gmra.mxu0 %v821
    %v831 = vpop.f32.mrf.mxu0
    %v832 = vadd.f32 %v803, %v831
    %v833 = vpop.f32.mrf.mxu0
    %834 = vdwg.mxu0
    %v835 = vadd.f32 %v832, %v279
    %v836 = vtanh.pop %v835
    %v837 = vpack.c.bf16 %v836, %v836
    %v838 = vld [vmem:[#allocation13] sm:$0xf]
    %v839 = vld [vmem:[#allocation13 + $0x4] sm:$0xf]
    %v840 = vld [vmem:[#allocation13 + $0x8] sm:$0xf]
    %v841 = vld [vmem:[#allocation13 + $0xc] sm:$0xf]
    %v842 = vld [vmem:[#allocation13 + $0x10] sm:$0xf]
    %v843 = vld [vmem:[#allocation13 + $0x14] sm:$0xf]
    %v844 = vld [vmem:[#allocation13 + $0x18] sm:$0xf]
    %v845 = vld [vmem:[#allocation13 + $0x1c] sm:$0xf]
    %v846 = vld [vmem:[#allocation13 + $0x20] sm:$0xf]
    %v847 = vld [vmem:[#allocation13 + $0x24] sm:$0xf]
    %v848 = vld [vmem:[#allocation13 + $0x28] sm:$0xf]
    %v849 = vld [vmem:[#allocation13 + $0x2c] sm:$0xf]
    %v850 = vld [vmem:[#allocation13 + $0x30] sm:$0xf]
    %v851 = vld [vmem:[#allocation13 + $0x34] sm:$0xf]
    %v852 = vld [vmem:[#allocation13 + $0x38] sm:$0xf]
    %v853 = vld [vmem:[#allocation13 + $0x3c] sm:$0xf]
    %v854 = vld [vmem:[%s9] sm:$0x1]
    %v856 = vperm.slane %v854, 0
    %v874 = vunpack.c.l.b16 %v838
    %v875 = vunpack.c.l.b16 %v839
    %v876 = vunpack.c.l.b16 %v840
    %v877 = vunpack.c.l.b16 %v841
    %v878 = vunpack.c.l.b16 %v842
    %v879 = vunpack.c.l.b16 %v843
    %v880 = vunpack.c.l.b16 %v844
    %v881 = vunpack.c.l.b16 %v845
    %v882 = vunpack.c.l.b16 %v846
    %v883 = vunpack.c.l.b16 %v847
    %v884 = vunpack.c.l.b16 %v848
    %v885 = vunpack.c.l.b16 %v849
    %v886 = vunpack.c.l.b16 %v850
    %v887 = vunpack.c.l.b16 %v851
    %v888 = vunpack.c.l.b16 %v852
    %v889 = vunpack.c.l.b16 %v853
    %v890 = vpack.c.b16 %v875, %v874
    %v891 = vpack.c.b16 %v877, %v876
    %v892 = vpack.c.b16 %v879, %v878
    %v893 = vpack.c.b16 %v881, %v880
    %v894 = vpack.c.b16 %v883, %v882
    %v895 = vpack.c.b16 %v885, %v884
    %v896 = vpack.c.b16 %v887, %v886
    %v897 = vpack.c.b16 %v889, %v888
    %906 = vmatpush.bf16.msra.mxu0 %v897
    %907 = vmatpush.bf16.msra.mxu0 %v896
    %908 = vmatpush.bf16.msra.mxu0 %v895
    %909 = vmatpush.bf16.msra.mxu0 %v894
    %910 = vmatpush.bf16.msra.mxu0 %v893
    %911 = vmatpush.bf16.msra.mxu0 %v892
    %912 = vmatpush.bf16.msra.mxu0 %v891
    %913 = vmatpush.bf16.msra.mxu0 %v890
    %914 = vmatmul.bf16.gmra.mxu0 %v837
    %v915 = vpop.f32.mrf.mxu0
    %v916 = vadd.f32 %v856, %v915
    %v917 = vpop.f32.mrf.mxu0
    %918 = vdwg.mxu0
    %919 = vst [vmem:[#allocation14] sm:$0xff] %v916
    %920 = vst [vmem:[#allocation15] sm:$0xff] %v820
    %s921 = scalar_lea.vmem [#allocation15], 8
    %922 = vst [vmem:[%s921] sm:$0xff] %v836
    // Predicated region
    $region70: #{tpu_custom_call.1} parent=1 // pred_check
      _
    $region71: #{tpu_custom_call.1} parent=1 // pred_check_branch
      %924 = sbr.rel (0) target = $region73
    $region72: #{tpu_custom_call.1} parent=1 // pred_region
      %926 = vsyncadd [#allocation4], 0
      %s928 = sshll.u32 [#allocation14], 4
      %s929 = int_to_ptr.vmem [resolvable:$true] %s928
      %s930 = sshll.u32 %s10, 4
      %s931 = int_to_ptr.hbm [resolvable:$true] %s930
      %933 = dma.vmem_to_hbm [thread:$0]  %s929, 128, %s931, [#allocation4]
    $region73: #{tpu_custom_call.1} parent=1 // pred_fallthru
      _
    // Predicated region
    $region74: #{tpu_custom_call.1} parent=1 // pred_check
      _
    $region75: #{tpu_custom_call.1} parent=1 // pred_check_branch
      %935 = sbr.rel (0) target = $region77
    $region76: #{tpu_custom_call.1} parent=1 // pred_region
      %937 = vsyncadd [#allocation16], 0
      %s938 = sshll.u32 [#allocation15], 4
      %s939 = int_to_ptr.vmem [resolvable:$true] %s938
      %s940 = sshll.u32 %s11, 4
      %s941 = int_to_ptr.hbm [resolvable:$true] %s940
      %946 = dma.vmem_to_hbm [thread:$0]  %s939, 256, %s941, [#allocation16], 128, 128, 8
    $region77: #{tpu_custom_call.1} parent=1 // pred_fallthru
      _
    // Predicated region
    $region78: #{tpu_custom_call.1} parent=1 // pred_check
      _
    $region79: #{tpu_custom_call.1} parent=1 // pred_check_branch
      %948 = sbr.rel (0) target = $region81
    $region80: #{tpu_custom_call.1} parent=1 // pred_region
      %950 = dma.done [#allocation4], 128
    $region81: #{tpu_custom_call.1} parent=1 // pred_fallthru
      _
    // Predicated region
    $region82: #{tpu_custom_call.1} parent=1 // pred_check
      _
    $region83: #{tpu_custom_call.1} parent=1 // pred_check_branch
      %952 = sbr.rel (0) target = $region85
    $region84: #{tpu_custom_call.1} parent=1 // pred_region
      %954 = dma.done [#allocation16], 256
    $region85: #{tpu_custom_call.1} parent=1 // pred_fallthru
      _
    %955 = vsyncpa [#allocation3], 1
    %956 = vsyncpa [#allocation6], 1
    %957 = vsyncpa [#allocation9], 1
    %958 = vsyncpa [#allocation12], 1
    %959 = vsyncpa [#allocation4], 1
    %960 = vsyncpa [#allocation16], 1

</llo_original>
